<compile_context>
chip_gen: v5e
topology: v5e:2x2
jax: 0.10.0
libtpu: 0.0.40
codegen_flags: <defaults>
</compile_context>

<pallas_src>
import functools
import math

import jax
import jax.numpy as jnp
from jax.experimental import pallas as pl
from jax.experimental.pallas import tpu as pltpu

# ----------------------------- config ---------------------------------------
EMBED = 32            # embed_size
HEADS = 4             # heads
HEAD_DIM = EMBED // HEADS
FWD_EXP = 2           # forward_expansion
HIDDEN = FWD_EXP * EMBED
BATCH = 2
SEQ = 8               # value_len == key_len == query_len
LN_EPS = 1e-5
NUM_ROW_BLOCKS = 1    # set to 2 on v7x to use both TensorCores
# TODO(synk): dropout is identity here (eval mode); training-mode dropout RNG not implemented.


# ----------------------------- kernel ---------------------------------------
def _layernorm(x, w, b):
    # LayerNorm over last dim, biased variance, eps=1e-5 (PyTorch default).
    mu = jnp.mean(x, axis=-1, keepdims=True)
    xc = x - mu
    var = jnp.mean(xc * xc, axis=-1, keepdims=True)
    return xc * jax.lax.rsqrt(var + LN_EPS) * w + b


def transformer_block_kernel(
    q_ref, k_ref, v_ref, bias_ref,
    mat_ref, hid_ref, vec_ref,
    o_ref,
    *, heads, embed, hidden, kv_rows,
):
    f32 = jnp.float32
    E, H, R = embed, heads, kv_rows

    q = q_ref[...]            # (rq, E)   query rows for this block
    k = k_ref[...]            # (R, E)    all key rows (batch-flattened)
    v = v_ref[...]            # (R, E)    all value rows

    # Static row offsets into the packed matrix slab (all multiples of 8).
    o_wq, o_wk, o_wv, o_wo, o_w2, o_rm = 0, E, 2 * E, 3 * E, 4 * E, 4 * E + hidden
    wqT = mat_ref[o_wq:o_wq + E]          # (E, E)  pre-transposed, 1/sqrt(E) folded in
    wkT = mat_ref[o_wk:o_wk + E]          # (E, E)
    wvT = mat_ref[o_wv:o_wv + E]          # (E, E)
    woT = mat_ref[o_wo:o_wo + E]          # (E, E)
    w2T = mat_ref[o_w2:o_w2 + hidden]     # (HIDDEN, E)
    rowmask = mat_ref[o_rm:o_rm + H * R]  # (H*R, E): [h*R+r, e] = 1 if e//d == h

    # QKV projections (per-head weights folded into block-diagonal matrices).
    Q = jnp.dot(q, wqT, preferred_element_type=f32)      # (rq, E), scale folded in
    K = jnp.dot(k, wkT, preferred_element_type=f32)      # (R, E)
    V = jnp.dot(v, wvT, preferred_element_type=f32)      # (R, E)

    # Head-block expansion: row block h keeps only head h's lanes.
    K_exp = jnp.concatenate([K] * H, axis=0) * rowmask   # (H*R, E)
    V_exp = jnp.concatenate([V] * H, axis=0) * rowmask   # (H*R, E)

    # Packed per-head energies: S[i, h*R + r] = <Q_h[i], K_h[r]> (one matmul).
    S = jax.lax.dot_general(Q, K_exp, (((1,), (1,)), ((), ())),
                            preferred_element_type=f32)  # (rq, H*R)

    # Additive bias carries the attention mask AND the cross-batch block mask.
    logits = S + bias_ref[...]
    # Single per-row max across all heads (a valid shift for every head's
    # softmax); differs from a per-head max only if an entire query row is
    # fully masked (degenerate case, not exercised here).
    logits = logits - jnp.max(logits, axis=-1, keepdims=True)
    p = jnp.exp(logits)                                  # masked entries -> 0

    # Per-head denominators broadcast across each head's lane block, and the
    # head-concatenated unnormalized attention output — both single matmuls.
    denom = jnp.dot(p, rowmask, preferred_element_type=f32)   # (rq, E)
    attn = jnp.dot(p, V_exp, preferred_element_type=f32)      # (rq, E)
    attn = attn * pl.reciprocal(denom, approx=True)

    # fc_out + residual + norm1 (dropout = identity).
    x = jnp.dot(attn, woT, preferred_element_type=f32) + vec_ref[0:1] + q
    x = _layernorm(x, vec_ref[1:2], vec_ref[2:3])

    # feed-forward: Linear -> ReLU -> Linear.
    w1T = hid_ref[0:E]                                   # (E, HIDDEN)
    b1 = hid_ref[E:E + 1]                                # (1, HIDDEN)
    h1 = jnp.maximum(jnp.dot(x, w1T, preferred_element_type=f32) + b1, 0.0)
    ff = jnp.dot(h1, w2T, preferred_element_type=f32) + vec_ref[3:4]

    # residual + norm2 (dropout = identity).
    out = _layernorm(ff + x, vec_ref[4:5], vec_ref[5:6])
    o_ref[...] = out.astype(o_ref.dtype)


# ----------------------------- parameter packing (done once) -----------------
def pack_params(p):
    """Fold per-head weights into block-diag matrices, pre-transpose, pre-scale,
    and pack everything into three slabs. Called once per parameter set."""
    eye_h = jnp.eye(HEADS, dtype=jnp.float32)
    scale = 1.0 / math.sqrt(float(EMBED))
    wq_bd = jnp.kron(eye_h, p["Wq"])
    wk_bd = jnp.kron(eye_h, p["Wk"])
    wv_bd = jnp.kron(eye_h, p["Wv"])

    R = BATCH * SEQ
    rows = jnp.arange(HEADS * R) // R          # head index per expanded row
    cols = jnp.arange(EMBED) // HEAD_DIM       # head index per lane
    rowmask = (rows[:, None] == cols[None, :]).astype(jnp.float32)   # (H*R, E)

    mat_slab = jnp.concatenate([
        wq_bd.T * scale,          # rows [0, E)
        wk_bd.T,                  # rows [E, 2E)
        wv_bd.T,                  # rows [2E, 3E)
        p["Wo"].T,                # rows [3E, 4E)
        p["W2"].T,                # rows [4E, 4E+HIDDEN)
        rowmask,                  # rows [4E+HIDDEN, 4E+HIDDEN+H*R)
    ], axis=0).astype(jnp.float32)

    hid_slab = jnp.concatenate([
        p["W1"].T,                             # rows [0, E)
        p["b1"].reshape(1, HIDDEN),            # row E
        jnp.zeros((7, HIDDEN), jnp.float32),   # pad to multiple of 8
    ], axis=0).astype(jnp.float32)

    vec_slab = jnp.stack([
        p["bo"], p["ln1_w"], p["ln1_b"], p["b2"], p["ln2_w"], p["ln2_b"],
        jnp.zeros((EMBED,), jnp.float32), jnp.zeros((EMBED,), jnp.float32),
    ], axis=0).astype(jnp.float32)             # (8, E)

    return {"mat": mat_slab, "hid": hid_slab, "vec": vec_slab}


# ----------------------------- wrapper ---------------------------------------
@jax.jit
def transformer_block(value, key, query, mask, mat_slab, hid_slab, vec_slab):
    B, Lq, E = query.shape
    Lk = key.shape[1]
    R = B * Lq                      # total query rows (== total key rows here)
    RK = B * Lk

    q2 = query.reshape(R, E)
    k2 = key.reshape(RK, E)
    v2 = value.reshape(RK, E)

    # Block-diagonal additive attention bias (masked / cross-batch -> -1e20),
    # tiled across heads to match the packed (rows, H*RK) energy layout.
    same_batch = jnp.eye(B, dtype=jnp.float32)[:, None, :, None]       # (B,1,B,1)
    keep = (mask.astype(jnp.float32)[:, :, None, :] * same_batch).reshape(R, RK)
    bias = jnp.where(keep == 0.0, jnp.float32(-1e20), jnp.float32(0.0))
    bias = jnp.tile(bias, (1, HEADS))                                   # (R, H*RK)

    rb = R // NUM_ROW_BLOCKS
    kernel = functools.partial(
        transformer_block_kernel,
        heads=HEADS, embed=E, hidden=HIDDEN, kv_rows=RK)

    out = pl.pallas_call(
        kernel,
        out_shape=jax.ShapeDtypeStruct((R, E), jnp.float32),
        grid_spec=pltpu.PrefetchScalarGridSpec(
            num_scalar_prefetch=0,
            grid=(NUM_ROW_BLOCKS,),
            in_specs=[
                pl.BlockSpec((rb, E), lambda i: (i, 0)),               # query rows
                pl.BlockSpec((RK, E), lambda i: (0, 0)),               # keys (full)
                pl.BlockSpec((RK, E), lambda i: (0, 0)),               # values (full)
                pl.BlockSpec((rb, HEADS * RK), lambda i: (i, 0)),      # attn bias rows
                pl.BlockSpec(mat_slab.shape, lambda i: (0, 0)),        # matrix slab
                pl.BlockSpec(hid_slab.shape, lambda i: (0, 0)),        # W1/b1 slab
                pl.BlockSpec(vec_slab.shape, lambda i: (0, 0)),        # bias/LN slab
            ],
            out_specs=pl.BlockSpec((rb, E), lambda i: (i, 0)),
        ),
        compiler_params=pltpu.CompilerParams(
            dimension_semantics=("parallel",)),
    )(q2, k2, v2, bias, mat_slab, hid_slab, vec_slab)

    return out.reshape(B, Lq, E)


# ----------------------------- pure-JAX reference ----------------------------
def reference_block(value, key, query, mask, p):
    N, Lq, E = query.shape
    d = HEAD_DIM

    def head_proj(x, W):
        xh = x.reshape(N, x.shape[1], HEADS, d)
        return jnp.einsum("nlhj,ij->nlhi", xh, W)

    Q = head_proj(query, p["Wq"])
    K = head_proj(key, p["Wk"])
    V = head_proj(value, p["Wv"])
    energy = jnp.einsum("nqhd,nkhd->nhqk", Q, K)
    energy = jnp.where(mask[:, None, :, :] == 0.0, -1e20, energy)
    attn = jax.nn.softmax(energy / math.sqrt(float(E)), axis=-1)
    out = jnp.einsum("nhqk,nkhd->nqhd", attn, V).reshape(N, Lq, E)
    out = out @ p["Wo"].T + p["bo"]

    def ln(x, w, b):
        mu = jnp.mean(x, axis=-1, keepdims=True)
        var = jnp.mean((x - mu) ** 2, axis=-1, keepdims=True)
        return (x - mu) / jnp.sqrt(var + LN_EPS) * w + b

    x = ln(out + query, p["ln1_w"], p["ln1_b"])
    ff = jnp.maximum(x @ p["W1"].T + p["b1"], 0.0) @ p["W2"].T + p["b2"]
    return ln(ff + x, p["ln2_w"], p["ln2_b"])


# ----------------------------- main ------------------------------------------
if __name__ == "__main__":
    root = jax.random.PRNGKey(0)
    keys = jax.random.split(root, 16)

    # Deterministic synthetic parameters (shapes follow the module __init__).
    s = 0.2
    params = {
        "Wq": s * jax.random.normal(keys[0], (HEAD_DIM, HEAD_DIM), jnp.float32),
        "Wk": s * jax.random.normal(keys[1], (HEAD_DIM, HEAD_DIM), jnp.float32),
        "Wv": s * jax.random.normal(keys[2], (HEAD_DIM, HEAD_DIM), jnp.float32),
        "Wo": s * jax.random.normal(keys[3], (EMBED, EMBED), jnp.float32),
        "bo": s * jax.random.normal(keys[4], (EMBED,), jnp.float32),
        "ln1_w": 1.0 + 0.1 * jax.random.normal(keys[5], (EMBED,), jnp.float32),
        "ln1_b": 0.1 * jax.random.normal(keys[6], (EMBED,), jnp.float32),
        "W1": s * jax.random.normal(keys[7], (HIDDEN, EMBED), jnp.float32),
        "b1": s * jax.random.normal(keys[8], (HIDDEN,), jnp.float32),
        "W2": s * jax.random.normal(keys[9], (EMBED, HIDDEN), jnp.float32),
        "b2": s * jax.random.normal(keys[10], (EMBED,), jnp.float32),
        "ln2_w": 1.0 + 0.1 * jax.random.normal(keys[11], (EMBED,), jnp.float32),
        "ln2_b": 0.1 * jax.random.normal(keys[12], (EMBED,), jnp.float32),
    }

    value = jax.random.normal(keys[13], (BATCH, SEQ, EMBED), jnp.float32)
    key_t = jax.random.normal(keys[14], (BATCH, SEQ, EMBED), jnp.float32)
    query = jax.random.normal(keys[15], (BATCH, SEQ, EMBED), jnp.float32)

    # mask: 1 = attend, 0 = masked. Second batch element masks the last 2 keys.
    mask = jnp.ones((BATCH, SEQ, SEQ), jnp.float32)
    mask = mask.at[1, :, -2:].set(0.0)

    # One-time parameter packing (hoisted out of the per-call path).
    packed = jax.tree_util.tree_map(jax.block_until_ready, pack_params(params))

    out = jax.block_until_ready(
        transformer_block(value, key_t, query, mask,
                          packed["mat"], packed["hid"], packed["vec"]))
    ref = reference_block(value, key_t, query, mask, params)

    assert out.shape == (BATCH, SEQ, EMBED)
    max_err = float(jnp.max(jnp.abs(out - ref)))
    if max_err > 2e-3:   # approx-reciprocal softmax denom contributes ~1e-4
        raise AssertionError(f"kernel/reference mismatch: max_err={max_err}")

    print("KERNEL_OK")
</pallas_src>

<mosaic_0001>
module attributes {stable_mosaic.version = 11 : i64} {
  func.func @transformer_block_kernel(%arg0: i32, %arg1: memref<16x32xf32, #tpu.memory_space<vmem>>, %arg2: memref<16x32xf32, #tpu.memory_space<vmem>>, %arg3: memref<16x32xf32, #tpu.memory_space<vmem>>, %arg4: memref<16x64xf32, #tpu.memory_space<vmem>>, %arg5: memref<256x32xf32, #tpu.memory_space<vmem>>, %arg6: memref<40x64xf32, #tpu.memory_space<vmem>>, %arg7: memref<8x32xf32, #tpu.memory_space<vmem>>, %arg8: memref<16x32xf32, #tpu.memory_space<vmem>>) attributes {dimension_semantics = [#tpu.dimension_semantics<parallel>], iteration_bounds = array<i64: 1>, scalar_prefetch = 0 : i64, scratch_operands = 0 : i64, tpu.core_type = #tpu.core_type<tc>, window_params = [{transform_indices = @transform_0, window_bounds = array<i64: 16, 32>}, {pipeline_mode = #tpu.pipeline_mode<synchronous>, transform_indices = @transform_1, window_bounds = array<i64: 16, 32>}, {pipeline_mode = #tpu.pipeline_mode<synchronous>, transform_indices = @transform_2, window_bounds = array<i64: 16, 32>}, {transform_indices = @transform_3, window_bounds = array<i64: 16, 64>}, {pipeline_mode = #tpu.pipeline_mode<synchronous>, transform_indices = @transform_4, window_bounds = array<i64: 256, 32>}, {pipeline_mode = #tpu.pipeline_mode<synchronous>, transform_indices = @transform_5, window_bounds = array<i64: 40, 64>}, {pipeline_mode = #tpu.pipeline_mode<synchronous>, transform_indices = @transform_6, window_bounds = array<i64: 8, 32>}, {transform_indices = @transform_7, window_bounds = array<i64: 16, 32>}]} {
    %c0 = arith.constant 0 : index
    %c0_0 = arith.constant 0 : index
    %0 = vector.load %arg1[%c0, %c0_0] : memref<16x32xf32, #tpu.memory_space<vmem>>, vector<16x32xf32>
    %c0_1 = arith.constant 0 : index
    %c0_2 = arith.constant 0 : index
    %1 = vector.load %arg2[%c0_1, %c0_2] : memref<16x32xf32, #tpu.memory_space<vmem>>, vector<16x32xf32>
    %c0_3 = arith.constant 0 : index
    %c0_4 = arith.constant 0 : index
    %2 = vector.load %arg3[%c0_3, %c0_4] : memref<16x32xf32, #tpu.memory_space<vmem>>, vector<16x32xf32>
    %c0_5 = arith.constant 0 : index
    %c0_6 = arith.constant 0 : index
    %3 = vector.load %arg5[%c0_5, %c0_6] : memref<256x32xf32, #tpu.memory_space<vmem>>, vector<32x32xf32>
    %c32 = arith.constant 32 : index
    %c0_7 = arith.constant 0 : index
    %4 = vector.load %arg5[%c32, %c0_7] : memref<256x32xf32, #tpu.memory_space<vmem>>, vector<32x32xf32>
    %c64 = arith.constant 64 : index
    %c0_8 = arith.constant 0 : index
    %5 = vector.load %arg5[%c64, %c0_8] : memref<256x32xf32, #tpu.memory_space<vmem>>, vector<32x32xf32>
    %c96 = arith.constant 96 : index
    %c0_9 = arith.constant 0 : index
    %6 = vector.load %arg5[%c96, %c0_9] : memref<256x32xf32, #tpu.memory_space<vmem>>, vector<32x32xf32>
    %c128 = arith.constant 128 : index
    %c0_10 = arith.constant 0 : index
    %7 = vector.load %arg5[%c128, %c0_10] : memref<256x32xf32, #tpu.memory_space<vmem>>, vector<64x32xf32>
    %c192 = arith.constant 192 : index
    %c0_11 = arith.constant 0 : index
    %8 = vector.load %arg5[%c192, %c0_11] : memref<256x32xf32, #tpu.memory_space<vmem>>, vector<64x32xf32>
    %cst = arith.constant dense<0.000000e+00> : vector<16x32xf32>
    %9 = tpu.matmul %0, %3, %cst {dimension_numbers = #tpu.dot_dimension_numbers<[1], [0], [0], [1], [0, 0, 1, 1], [], []>} : vector<16x32xf32>, vector<32x32xf32>, vector<16x32xf32> -> vector<16x32xf32>
    %cst_12 = arith.constant dense<0.000000e+00> : vector<16x32xf32>
    %10 = tpu.matmul %1, %4, %cst_12 {dimension_numbers = #tpu.dot_dimension_numbers<[1], [0], [0], [1], [0, 0, 1, 1], [], []>} : vector<16x32xf32>, vector<32x32xf32>, vector<16x32xf32> -> vector<16x32xf32>
    %cst_13 = arith.constant dense<0.000000e+00> : vector<16x32xf32>
    %11 = tpu.matmul %2, %5, %cst_13 {dimension_numbers = #tpu.dot_dimension_numbers<[1], [0], [0], [1], [0, 0, 1, 1], [], []>} : vector<16x32xf32>, vector<32x32xf32>, vector<16x32xf32> -> vector<16x32xf32>
    %12 = tpu.concatenate %10, %10, %10, %10 in 0 : vector<16x32xf32>, vector<16x32xf32>, vector<16x32xf32>, vector<16x32xf32> -> vector<64x32xf32>
    %13 = arith.mulf %12, %8 : vector<64x32xf32>
    %14 = tpu.concatenate %11, %11, %11, %11 in 0 : vector<16x32xf32>, vector<16x32xf32>, vector<16x32xf32>, vector<16x32xf32> -> vector<64x32xf32>
    %15 = arith.mulf %14, %8 : vector<64x32xf32>
    %cst_14 = arith.constant dense<0.000000e+00> : vector<16x64xf32>
    %16 = tpu.matmul %9, %13, %cst_14 {dimension_numbers = #tpu.dot_dimension_numbers<[1], [1], [0], [0], [0, 0, 1, 0], [], []>} : vector<16x32xf32>, vector<64x32xf32>, vector<16x64xf32> -> vector<16x64xf32>
    %c0_15 = arith.constant 0 : index
    %c0_16 = arith.constant 0 : index
    %17 = vector.load %arg4[%c0_15, %c0_16] : memref<16x64xf32, #tpu.memory_space<vmem>>, vector<16x64xf32>
    %18 = arith.addf %16, %17 : vector<16x64xf32>
    %cst_17 = arith.constant dense<0xFF800000> : vector<16xf32>
    %19 = vector.multi_reduction <maximumf>, %18, %cst_17 [1] : vector<16x64xf32> to vector<16xf32>
    %20 = vector.shape_cast %19 : vector<16xf32> to vector<16x1xf32>
    %21 = vector.broadcast %20 : vector<16x1xf32> to vector<16x64xf32>
    %22 = arith.subf %18, %21 : vector<16x64xf32>
    %23 = math.exp %22 : vector<16x64xf32>
    %cst_18 = arith.constant dense<0.000000e+00> : vector<16x32xf32>
    %24 = tpu.matmul %23, %8, %cst_18 {dimension_numbers = #tpu.dot_dimension_numbers<[1], [0], [0], [1], [0, 0, 1, 1], [], []>} : vector<16x64xf32>, vector<64x32xf32>, vector<16x32xf32> -> vector<16x32xf32>
    %cst_19 = arith.constant dense<0.000000e+00> : vector<16x32xf32>
    %25 = tpu.matmul %23, %15, %cst_19 {dimension_numbers = #tpu.dot_dimension_numbers<[1], [0], [0], [1], [0, 0, 1, 1], [], []>} : vector<16x64xf32>, vector<64x32xf32>, vector<16x32xf32> -> vector<16x32xf32>
    %26 = tpu.reciprocal %24 {approx = true} : vector<16x32xf32> -> vector<16x32xf32>
    %27 = arith.mulf %25, %26 : vector<16x32xf32>
    %cst_20 = arith.constant dense<0.000000e+00> : vector<16x32xf32>
    %28 = tpu.matmul %27, %6, %cst_20 {dimension_numbers = #tpu.dot_dimension_numbers<[1], [0], [0], [1], [0, 0, 1, 1], [], []>} : vector<16x32xf32>, vector<32x32xf32>, vector<16x32xf32> -> vector<16x32xf32>
    %c0_21 = arith.constant 0 : index
    %c0_22 = arith.constant 0 : index
    %29 = vector.load %arg7[%c0_21, %c0_22] : memref<8x32xf32, #tpu.memory_space<vmem>>, vector<1x32xf32>
    %30 = vector.broadcast %29 : vector<1x32xf32> to vector<16x32xf32>
    %31 = arith.addf %28, %30 : vector<16x32xf32>
    %32 = arith.addf %31, %0 : vector<16x32xf32>
    %c1 = arith.constant 1 : index
    %c0_23 = arith.constant 0 : index
    %33 = vector.load %arg7[%c1, %c0_23] : memref<8x32xf32, #tpu.memory_space<vmem>>, vector<1x32xf32>
    %c2 = arith.constant 2 : index
    %c0_24 = arith.constant 0 : index
    %34 = vector.load %arg7[%c2, %c0_24] : memref<8x32xf32, #tpu.memory_space<vmem>>, vector<1x32xf32>
    %cst_25 = arith.constant dense<0.000000e+00> : vector<16xf32>
    %35 = vector.multi_reduction <add>, %32, %cst_25 [1] : vector<16x32xf32> to vector<16xf32>
    %36 = vector.shape_cast %35 : vector<16xf32> to vector<16x1xf32>
    %cst_26 = arith.constant 3.200000e+01 : f32
    %37 = vector.broadcast %cst_26 : f32 to vector<16x1xf32>
    %38 = arith.divf %36, %37 : vector<16x1xf32>
    %39 = vector.broadcast %38 : vector<16x1xf32> to vector<16x32xf32>
    %40 = arith.subf %32, %39 : vector<16x32xf32>
    %41 = arith.mulf %40, %40 : vector<16x32xf32>
    %cst_27 = arith.constant dense<0.000000e+00> : vector<16xf32>
    %42 = vector.multi_reduction <add>, %41, %cst_27 [1] : vector<16x32xf32> to vector<16xf32>
    %43 = vector.shape_cast %42 : vector<16xf32> to vector<16x1xf32>
    %cst_28 = arith.constant 3.200000e+01 : f32
    %44 = vector.broadcast %cst_28 : f32 to vector<16x1xf32>
    %45 = arith.divf %43, %44 : vector<16x1xf32>
    %cst_29 = arith.constant 9.99999974E-6 : f32
    %46 = vector.broadcast %cst_29 : f32 to vector<16x1xf32>
    %47 = arith.addf %45, %46 : vector<16x1xf32>
    %48 = math.rsqrt %47 : vector<16x1xf32>
    %49 = vector.broadcast %48 : vector<16x1xf32> to vector<16x32xf32>
    %50 = arith.mulf %40, %49 : vector<16x32xf32>
    %51 = vector.broadcast %33 : vector<1x32xf32> to vector<16x32xf32>
    %52 = arith.mulf %50, %51 : vector<16x32xf32>
    %53 = vector.broadcast %34 : vector<1x32xf32> to vector<16x32xf32>
    %54 = arith.addf %52, %53 : vector<16x32xf32>
    %c0_30 = arith.constant 0 : index
    %c0_31 = arith.constant 0 : index
    %55 = vector.load %arg6[%c0_30, %c0_31] : memref<40x64xf32, #tpu.memory_space<vmem>>, vector<32x64xf32>
    %c32_32 = arith.constant 32 : index
    %c0_33 = arith.constant 0 : index
    %56 = vector.load %arg6[%c32_32, %c0_33] : memref<40x64xf32, #tpu.memory_space<vmem>>, vector<1x64xf32>
    %cst_34 = arith.constant dense<0.000000e+00> : vector<16x64xf32>
    %57 = tpu.matmul %54, %55, %cst_34 {dimension_numbers = #tpu.dot_dimension_numbers<[1], [0], [0], [1], [0, 0, 1, 1], [], []>} : vector<16x32xf32>, vector<32x64xf32>, vector<16x64xf32> -> vector<16x64xf32>
    %58 = vector.broadcast %56 : vector<1x64xf32> to vector<16x64xf32>
    %59 = arith.addf %57, %58 : vector<16x64xf32>
    %cst_35 = arith.constant 0.000000e+00 : f32
    %60 = vector.broadcast %cst_35 : f32 to vector<16x64xf32>
    %61 = arith.maximumf %59, %60 : vector<16x64xf32>
    %cst_36 = arith.constant dense<0.000000e+00> : vector<16x32xf32>
    %62 = tpu.matmul %61, %7, %cst_36 {dimension_numbers = #tpu.dot_dimension_numbers<[1], [0], [0], [1], [0, 0, 1, 1], [], []>} : vector<16x64xf32>, vector<64x32xf32>, vector<16x32xf32> -> vector<16x32xf32>
    %c3 = arith.constant 3 : index
    %c0_37 = arith.constant 0 : index
    %63 = vector.load %arg7[%c3, %c0_37] : memref<8x32xf32, #tpu.memory_space<vmem>>, vector<1x32xf32>
    %64 = vector.broadcast %63 : vector<1x32xf32> to vector<16x32xf32>
    %65 = arith.addf %62, %64 : vector<16x32xf32>
    %66 = arith.addf %65, %54 : vector<16x32xf32>
    %c4 = arith.constant 4 : index
    %c0_38 = arith.constant 0 : index
    %67 = vector.load %arg7[%c4, %c0_38] : memref<8x32xf32, #tpu.memory_space<vmem>>, vector<1x32xf32>
    %c5 = arith.constant 5 : index
    %c0_39 = arith.constant 0 : index
    %68 = vector.load %arg7[%c5, %c0_39] : memref<8x32xf32, #tpu.memory_space<vmem>>, vector<1x32xf32>
    %cst_40 = arith.constant dense<0.000000e+00> : vector<16xf32>
    %69 = vector.multi_reduction <add>, %66, %cst_40 [1] : vector<16x32xf32> to vector<16xf32>
    %70 = vector.shape_cast %69 : vector<16xf32> to vector<16x1xf32>
    %cst_41 = arith.constant 3.200000e+01 : f32
    %71 = vector.broadcast %cst_41 : f32 to vector<16x1xf32>
    %72 = arith.divf %70, %71 : vector<16x1xf32>
    %73 = vector.broadcast %72 : vector<16x1xf32> to vector<16x32xf32>
    %74 = arith.subf %66, %73 : vector<16x32xf32>
    %75 = arith.mulf %74, %74 : vector<16x32xf32>
    %cst_42 = arith.constant dense<0.000000e+00> : vector<16xf32>
    %76 = vector.multi_reduction <add>, %75, %cst_42 [1] : vector<16x32xf32> to vector<16xf32>
    %77 = vector.shape_cast %76 : vector<16xf32> to vector<16x1xf32>
    %cst_43 = arith.constant 3.200000e+01 : f32
    %78 = vector.broadcast %cst_43 : f32 to vector<16x1xf32>
    %79 = arith.divf %77, %78 : vector<16x1xf32>
    %cst_44 = arith.constant 9.99999974E-6 : f32
    %80 = vector.broadcast %cst_44 : f32 to vector<16x1xf32>
    %81 = arith.addf %79, %80 : vector<16x1xf32>
    %82 = math.rsqrt %81 : vector<16x1xf32>
    %83 = vector.broadcast %82 : vector<16x1xf32> to vector<16x32xf32>
    %84 = arith.mulf %74, %83 : vector<16x32xf32>
    %85 = vector.broadcast %67 : vector<1x32xf32> to vector<16x32xf32>
    %86 = arith.mulf %84, %85 : vector<16x32xf32>
    %87 = vector.broadcast %68 : vector<1x32xf32> to vector<16x32xf32>
    %88 = arith.addf %86, %87 : vector<16x32xf32>
    %c0_45 = arith.constant 0 : index
    %c0_46 = arith.constant 0 : index
    %89 = vector.load %arg8[%c0_45, %c0_46] : memref<16x32xf32, #tpu.memory_space<vmem>>, vector<16x32xf32>
    tpu.vector_store %arg8[%c0_45, %c0_46], %88 {strides = array<i32>} : memref<16x32xf32, #tpu.memory_space<vmem>>, vector<16x32xf32>,
    return
  }
  func.func @transform_0(%arg0: i32) -> (i32, i32) {
    %c0_i32 = arith.constant 0 : i32
    %c0_i32_0 = arith.constant 0 : i32
    return %arg0, %c0_i32 : i32, i32
  }
  func.func @transform_1(%arg0: i32) -> (i32, i32) {
    %c0_i32 = arith.constant 0 : i32
    %c0_i32_0 = arith.constant 0 : i32
    %c0_i32_1 = arith.constant 0 : i32
    return %c0_i32, %c0_i32_0 : i32, i32
  }
  func.func @transform_2(%arg0: i32) -> (i32, i32) {
    %c0_i32 = arith.constant 0 : i32
    %c0_i32_0 = arith.constant 0 : i32
    %c0_i32_1 = arith.constant 0 : i32
    return %c0_i32, %c0_i32_0 : i32, i32
  }
  func.func @transform_3(%arg0: i32) -> (i32, i32) {
    %c0_i32 = arith.constant 0 : i32
    %c0_i32_0 = arith.constant 0 : i32
    return %arg0, %c0_i32 : i32, i32
  }
  func.func @transform_4(%arg0: i32) -> (i32, i32) {
    %c0_i32 = arith.constant 0 : i32
    %c0_i32_0 = arith.constant 0 : i32
    %c0_i32_1 = arith.constant 0 : i32
    return %c0_i32, %c0_i32_0 : i32, i32
  }
  func.func @transform_5(%arg0: i32) -> (i32, i32) {
    %c0_i32 = arith.constant 0 : i32
    %c0_i32_0 = arith.constant 0 : i32
    %c0_i32_1 = arith.constant 0 : i32
    return %c0_i32, %c0_i32_0 : i32, i32
  }
  func.func @transform_6(%arg0: i32) -> (i32, i32) {
    %c0_i32 = arith.constant 0 : i32
    %c0_i32_0 = arith.constant 0 : i32
    %c0_i32_1 = arith.constant 0 : i32
    return %c0_i32, %c0_i32_0 : i32, i32
  }
  func.func @transform_7(%arg0: i32) -> (i32, i32) {
    %c0_i32 = arith.constant 0 : i32
    %c0_i32_0 = arith.constant 0 : i32
    return %arg0, %c0_i32 : i32, i32
  }
}

</mosaic_0001>

<llo_original>
// kernel: tile.9
$region0: #{tile.9}
  %s0 = inlined_call_operand.vmem [shape: f32[16,4,16], index: 0, kind: input, shape index: {}]
  %s1 = inlined_call_operand.vmem [shape: f32[16,64], index: 1, kind: output, shape index: {}]
  $region1: #{tile.9} parent=0
    #allocation0 [shape = 'u8[65536]{0}', space=vmem, size = 0x10000, scoped, tag = 'scoped mem for input reshape']
    %s3 = ssub.s32 16, 1
    %s4 = scalar_lea.vmem %s0, 60
    %v5 = vld [vmem:[%s4] sm:%s3]
    %s6 = scalar_lea.vmem [#allocation0], 120
    %7 = vst [vmem:[%s6] sm:%s3] %v5
    %s8 = scalar_lea.vmem %s0, 56
    %v9 = vld [vmem:[%s8] sm:%s3]
    %s10 = scalar_lea.vmem [#allocation0], 112
    %11 = vst [vmem:[%s10] sm:%s3] %v9
    %s12 = scalar_lea.vmem %s0, 52
    %v13 = vld [vmem:[%s12] sm:%s3]
    %s14 = scalar_lea.vmem [#allocation0], 104
    %15 = vst [vmem:[%s14] sm:%s3] %v13
    %s16 = scalar_lea.vmem %s0, 48
    %v17 = vld [vmem:[%s16] sm:%s3]
    %s18 = scalar_lea.vmem [#allocation0], 96
    %19 = vst [vmem:[%s18] sm:%s3] %v17
    %s20 = scalar_lea.vmem %s0, 44
    %v21 = vld [vmem:[%s20] sm:%s3]
    %s22 = scalar_lea.vmem [#allocation0], 88
    %23 = vst [vmem:[%s22] sm:%s3] %v21
    %s24 = scalar_lea.vmem %s0, 40
    %v25 = vld [vmem:[%s24] sm:%s3]
    %s26 = scalar_lea.vmem [#allocation0], 80
    %27 = vst [vmem:[%s26] sm:%s3] %v25
    %s28 = scalar_lea.vmem %s0, 36
    %v29 = vld [vmem:[%s28] sm:%s3]
    %s30 = scalar_lea.vmem [#allocation0], 72
    %31 = vst [vmem:[%s30] sm:%s3] %v29
    %s32 = scalar_lea.vmem %s0, 32
    %v33 = vld [vmem:[%s32] sm:%s3]
    %s34 = scalar_lea.vmem [#allocation0], 64
    %35 = vst [vmem:[%s34] sm:%s3] %v33
    %s36 = scalar_lea.vmem %s0, 28
    %v37 = vld [vmem:[%s36] sm:%s3]
    %s38 = scalar_lea.vmem [#allocation0], 56
    %39 = vst [vmem:[%s38] sm:%s3] %v37
    %s40 = scalar_lea.vmem %s0, 24
    %v41 = vld [vmem:[%s40] sm:%s3]
    %s42 = scalar_lea.vmem [#allocation0], 48
    %43 = vst [vmem:[%s42] sm:%s3] %v41
    %s44 = scalar_lea.vmem %s0, 20
    %v45 = vld [vmem:[%s44] sm:%s3]
    %s46 = scalar_lea.vmem [#allocation0], 40
    %47 = vst [vmem:[%s46] sm:%s3] %v45
    %s48 = scalar_lea.vmem %s0, 16
    %v49 = vld [vmem:[%s48] sm:%s3]
    %s50 = scalar_lea.vmem [#allocation0], 32
    %51 = vst [vmem:[%s50] sm:%s3] %v49
    %s52 = scalar_lea.vmem %s0, 12
    %v53 = vld [vmem:[%s52] sm:%s3]
    %s54 = scalar_lea.vmem [#allocation0], 24
    %55 = vst [vmem:[%s54] sm:%s3] %v53
    %s56 = scalar_lea.vmem %s0, 8
    %v57 = vld [vmem:[%s56] sm:%s3]
    %s58 = scalar_lea.vmem [#allocation0], 16
    %59 = vst [vmem:[%s58] sm:%s3] %v57
    %s60 = scalar_lea.vmem %s0, 4
    %v61 = vld [vmem:[%s60] sm:%s3]
    %s62 = scalar_lea.vmem [#allocation0], 8
    %63 = vst [vmem:[%s62] sm:%s3] %v61
    %v64 = vld [vmem:[%s0] sm:%s3]
    %65 = vst [vmem:[#allocation0] sm:%s3] %v64
    %v66 = vld [vmem:[#allocation0] ss:$8 sm:$0xf]
    %v67 = vld [vmem:[#allocation0] ss:$8 sm:$0xf0]
    %vm68 = vcmask 1047556
    %v69 = vsel %vm68, %v67, %v66
    %vm70 = vcmask 130048
    %71 = vst.msk [vmem:[%s1] sm:$0xff] %vm70, %v69
    %s72 = scalar_lea.vmem [#allocation0], 64
    %v73 = vld [vmem:[%s72] ss:$8 sm:$0xf]
    %s74 = scalar_lea.vmem [#allocation0], 64
    %v75 = vld [vmem:[%s74] ss:$8 sm:$0xf0]
    %vm76 = vcmask 1047556
    %v77 = vsel %vm76, %v75, %v73
    %vm78 = vcmask 130048
    %s79 = scalar_lea.vmem %s1, 8
    %80 = vst.msk [vmem:[%s79] sm:$0xff] %vm78, %v77
    %s81 = scalar_lea.vmem [#allocation0], 3
    %v82 = vld [vmem:[%s81] ss:$8 sm:$0xf]
    %s83 = scalar_lea.vmem [#allocation0], 3
    %v84 = vld [vmem:[%s83] ss:$8 sm:$0xf0]
    %vm85 = vcmask 1047556
    %v86 = vsel %vm85, %v84, %v82
    %87 = vrot.lane.b32.xlu0 %v86, 48
    %v88 = vpop.permute.xlu0 %87
    %vm89 = vcmask 523648
    %90 = vst.msk [vmem:[%s1] sm:$0xff] %vm89, %v88
    %s91 = scalar_lea.vmem [#allocation0], 67
    %v92 = vld [vmem:[%s91] ss:$8 sm:$0xf]
    %s93 = scalar_lea.vmem [#allocation0], 67
    %v94 = vld [vmem:[%s93] ss:$8 sm:$0xf0]
    %vm95 = vcmask 1047556
    %v96 = vsel %vm95, %v94, %v92
    %97 = vrot.lane.b32.xlu0 %v96, 48
    %v98 = vpop.permute.xlu0 %97
    %vm99 = vcmask 523648
    %s100 = scalar_lea.vmem %s1, 8
    %101 = vst.msk [vmem:[%s100] sm:$0xff] %vm99, %v98
    %s102 = scalar_lea.vmem [#allocation0], 2
    %v103 = vld [vmem:[%s102] ss:$8 sm:$0xf]
    %s104 = scalar_lea.vmem [#allocation0], 2
    %v105 = vld [vmem:[%s104] ss:$8 sm:$0xf0]
    %vm106 = vcmask 1047556
    %v107 = vsel %vm106, %v105, %v103
    %108 = vrot.lane.b32.xlu0 %v107, 32
    %v109 = vpop.permute.xlu0 %108
    %vm110 = vcmask 392448
    %111 = vst.msk [vmem:[%s1] sm:$0xff] %vm110, %v109
    %s112 = scalar_lea.vmem [#allocation0], 66
    %v113 = vld [vmem:[%s112] ss:$8 sm:$0xf]
    %s114 = scalar_lea.vmem [#allocation0], 66
    %v115 = vld [vmem:[%s114] ss:$8 sm:$0xf0]
    %vm116 = vcmask 1047556
    %v117 = vsel %vm116, %v115, %v113
    %118 = vrot.lane.b32.xlu0 %v117, 32
    %v119 = vpop.permute.xlu0 %118
    %vm120 = vcmask 392448
    %s121 = scalar_lea.vmem %s1, 8
    %122 = vst.msk [vmem:[%s121] sm:$0xff] %vm120, %v119
    %s123 = scalar_lea.vmem [#allocation0], 1
    %v124 = vld [vmem:[%s123] ss:$8 sm:$0xf]
    %s125 = scalar_lea.vmem [#allocation0], 1
    %v126 = vld [vmem:[%s125] ss:$8 sm:$0xf0]
    %vm127 = vcmask 1047556
    %v128 = vsel %vm127, %v126, %v124
    %129 = vrot.lane.b32.xlu0 %v128, 16
    %v130 = vpop.permute.xlu0 %129
    %vm131 = vcmask 261248
    %132 = vst.msk [vmem:[%s1] sm:$0xff] %vm131, %v130
    %s133 = scalar_lea.vmem [#allocation0], 65
    %v134 = vld [vmem:[%s133] ss:$8 sm:$0xf]
    %s135 = scalar_lea.vmem [#allocation0], 65
    %v136 = vld [vmem:[%s135] ss:$8 sm:$0xf0]
    %vm137 = vcmask 1047556
    %v138 = vsel %vm137, %v136, %v134
    %139 = vrot.lane.b32.xlu0 %v138, 16
    %v140 = vpop.permute.xlu0 %139
    %vm141 = vcmask 261248
    %s142 = scalar_lea.vmem %s1, 8
    %143 = vst.msk [vmem:[%s142] sm:$0xff] %vm141, %v140

// kernel: transformer_block.1
$region0: #{transformer_block.1}
  #allocation0 [shape = 'u32[]', space=smem, size = 0x4, offset = 0x4, fixed_abs, tag = 'smem constant byte address 0x4 - core index']
  #allocation1 [shape = 'u32[72,128]{1,0:T(1,128)}', space=vmem, size = 0x9000, scoped, tag = 'internal scratch']
  %s0 = inlined_call_operand.vmem [shape: f32[16,32], index: 0, kind: input, shape index: {}]
  %s1 = inlined_call_operand.vmem [shape: f32[16,32], index: 1, kind: input, shape index: {}]
  %s2 = inlined_call_operand.vmem [shape: f32[16,32], index: 2, kind: input, shape index: {}]
  %s3 = inlined_call_operand.vmem [shape: f32[16,64], index: 3, kind: input, shape index: {}]
  %s4 = inlined_call_operand.vmem [shape: f32[256,32], index: 4, kind: input, shape index: {}]
  %s5 = inlined_call_operand.vmem [shape: f32[40,64], index: 5, kind: input, shape index: {}]
  %s6 = inlined_call_operand.vmem [shape: f32[8,32], index: 6, kind: input, shape index: {}]
  %s7 = inlined_call_operand.hbm [shape: f32[16,32], index: 7, kind: output, shape index: {}]
  %s8 = sld [smem:[#allocation0]]
  $region38: #{transformer_block.1} parent=0
    _
  %s10 = ssub.s32 1, %s8
  %s11 = scalar_select 0, %s10, %s8
  $region1: #{transformer_block.1} parent=0
    #allocation2 [shape = 'u8[8192]{0}', space=vmem, size = 0x2000, scoped, tag = 'output window, operand 0, single buffered']
    #allocation3 [shape = 's32[1]{0}', space=sflag, size = 0x4, scoped, tag = 'scoped memory for transformer_block.1']
    %12 = vsyncpa [#allocation3], 0
    // Predicated region
    $region2: #{transformer_block.1} parent=1 // pred_check
      _
    $region3: #{transformer_block.1} parent=1 // pred_check_branch
      %14 = sbr.rel (0) target = $region5
    $region4: #{transformer_block.1} parent=1 // pred_region
      _
    $region5: #{transformer_block.1} parent=1 // pred_fallthru
      _
    // Predicated region
    $region6: #{transformer_block.1} parent=1 // pred_check
      _
    $region7: #{transformer_block.1} parent=1 // pred_check_branch
      %16 = sbr.rel (0) target = $region9
    $region8: #{transformer_block.1} parent=1 // pred_region
      _
    $region9: #{transformer_block.1} parent=1 // pred_fallthru
      _
    // Predicated region
    $region10: #{transformer_block.1} parent=1 // pred_check
      _
    $region11: #{transformer_block.1} parent=1 // pred_check_branch
      %18 = sbr.rel (0) target = $region13
    $region12: #{transformer_block.1} parent=1 // pred_region
      _
    $region13: #{transformer_block.1} parent=1 // pred_fallthru
      _
    // Predicated region
    $region14: #{transformer_block.1} parent=1 // pred_check
      _
    $region15: #{transformer_block.1} parent=1 // pred_check_branch
      %20 = sbr.rel (0) target = $region17
    $region16: #{transformer_block.1} parent=1 // pred_region
      _
    $region17: #{transformer_block.1} parent=1 // pred_fallthru
      _
    // Predicated region
    $region18: #{transformer_block.1} parent=1 // pred_check
      _
    $region19: #{transformer_block.1} parent=1 // pred_check_branch
      %22 = sbr.rel (0) target = $region21
    $region20: #{transformer_block.1} parent=1 // pred_region
      _
    $region21: #{transformer_block.1} parent=1 // pred_fallthru
      _
    // Predicated region
    $region22: #{transformer_block.1} parent=1 // pred_check
      _
    $region23: #{transformer_block.1} parent=1 // pred_check_branch
      %24 = sbr.rel (0) target = $region25
    $region24: #{transformer_block.1} parent=1 // pred_region
      _
    $region25: #{transformer_block.1} parent=1 // pred_fallthru
      _
    // Predicated region
    $region26: #{transformer_block.1} parent=1 // pred_check
      _
    $region27: #{transformer_block.1} parent=1 // pred_check_branch
      %26 = sbr.rel (0) target = $region29
    $region28: #{transformer_block.1} parent=1 // pred_region
      _
    $region29: #{transformer_block.1} parent=1 // pred_fallthru
      _
    %v27 = vld [vmem:[%s0] sm:$0xff]
    %v28 = vld [vmem:[%s0 + $0x8] sm:$0xff]
    %v29 = vld [vmem:[%s1] sm:$0xff]
    %v30 = vld [vmem:[%s1 + $0x8] sm:$0xff]
    %v31 = vld [vmem:[%s2] sm:$0xff]
    %v32 = vld [vmem:[%s2 + $0x8] sm:$0xff]
    %v33 = vld [vmem:[%s4] sm:$0xff]
    %v34 = vld [vmem:[%s4 + $0x8] sm:$0xff]
    %v35 = vld [vmem:[%s4 + $0x10] sm:$0xff]
    %v36 = vld [vmem:[%s4 + $0x18] sm:$0xff]
    %v37 = vld [vmem:[%s4 + $0x20] sm:$0xff]
    %v38 = vld [vmem:[%s4 + $0x28] sm:$0xff]
    %v39 = vld [vmem:[%s4 + $0x30] sm:$0xff]
    %v40 = vld [vmem:[%s4 + $0x38] sm:$0xff]
    %v41 = vld [vmem:[%s4 + $0x40] sm:$0xff]
    %v42 = vld [vmem:[%s4 + $0x48] sm:$0xff]
    %v43 = vld [vmem:[%s4 + $0x50] sm:$0xff]
    %v44 = vld [vmem:[%s4 + $0x58] sm:$0xff]
    %v45 = vld [vmem:[%s4 + $0x60] sm:$0xff]
    %v46 = vld [vmem:[%s4 + $0x68] sm:$0xff]
    %v47 = vld [vmem:[%s4 + $0x70] sm:$0xff]
    %v48 = vld [vmem:[%s4 + $0x78] sm:$0xff]
    %v49 = vld [vmem:[%s4 + $0x80] sm:$0xff]
    %v50 = vld [vmem:[%s4 + $0x88] sm:$0xff]
    %v51 = vld [vmem:[%s4 + $0x90] sm:$0xff]
    %v52 = vld [vmem:[%s4 + $0x98] sm:$0xff]
    %v53 = vld [vmem:[%s4 + $0xa0] sm:$0xff]
    %v54 = vld [vmem:[%s4 + $0xa8] sm:$0xff]
    %v55 = vld [vmem:[%s4 + $0xb0] sm:$0xff]
    %v56 = vld [vmem:[%s4 + $0xb8] sm:$0xff]
    %v57 = vld [vmem:[%s4 + $0xc0] sm:$0xff]
    %v58 = vld [vmem:[%s4 + $0xc8] sm:$0xff]
    %v59 = vld [vmem:[%s4 + $0xd0] sm:$0xff]
    %v60 = vld [vmem:[%s4 + $0xd8] sm:$0xff]
    %v61 = vld [vmem:[%s4 + $0xe0] sm:$0xff]
    %v62 = vld [vmem:[%s4 + $0xe8] sm:$0xff]
    %v63 = vld [vmem:[%s4 + $0xf0] sm:$0xff]
    %v64 = vld [vmem:[%s4 + $0xf8] sm:$0xff]
    %vm65 = vcmask 261120
    %v67 = vsel %vm65, %v27, 0
    %v70 = vsel %vm65, %v28, 0
    %72 = vmatpush.msra.mxu0 0.0
    %73 = vmatpush.msra.mxu0 0.0
    %74 = vmatpush.msra.mxu0 0.0
    %75 = vmatpush.msra.mxu0 0.0
    %76 = vmatpush.msra.mxu0 0.0
    %77 = vmatpush.msra.mxu0 0.0
    %78 = vmatpush.msra.mxu0 0.0
    %79 = vmatpush.msra.mxu0 0.0
    %80 = vmatpush.msra.mxu0 0.0
    %81 = vmatpush.msra.mxu0 0.0
    %82 = vmatpush.msra.mxu0 0.0
    %83 = vmatpush.msra.mxu0 0.0
    %84 = vmatpush.msra.mxu0 %v36
    %85 = vmatpush.msra.mxu0 %v35
    %86 = vmatpush.msra.mxu0 %v34
    %87 = vmatpush.msra.mxu0 %v33
    %88 = vmatmul.f32.gmra.mxu0 %v67
    %v89 = vpop.f32.mrf.mxu0
    %v90 = vadd.f32 0.0, %v89
    %91 = vmatmul.f32.gmra.mxu0 %v70
    %v92 = vpop.f32.mrf.mxu0
    %v93 = vadd.f32 0.0, %v92
    %94 = vdwg.mxu0
    %v96 = vsel %vm65, %v29, 0
    %v99 = vsel %vm65, %v30, 0
    %101 = vmatpush.msra.mxu0 0.0
    %102 = vmatpush.msra.mxu0 0.0
    %103 = vmatpush.msra.mxu0 0.0
    %104 = vmatpush.msra.mxu0 0.0
    %105 = vmatpush.msra.mxu0 0.0
    %106 = vmatpush.msra.mxu0 0.0
    %107 = vmatpush.msra.mxu0 0.0
    %108 = vmatpush.msra.mxu0 0.0
    %109 = vmatpush.msra.mxu0 0.0
    %110 = vmatpush.msra.mxu0 0.0
    %111 = vmatpush.msra.mxu0 0.0
    %112 = vmatpush.msra.mxu0 0.0
    %113 = vmatpush.msra.mxu0 %v40
    %114 = vmatpush.msra.mxu0 %v39
    %115 = vmatpush.msra.mxu0 %v38
    %116 = vmatpush.msra.mxu0 %v37
    %117 = vmatmul.f32.gmra.mxu0 %v96
    %v118 = vpop.f32.mrf.mxu0
    %v119 = vadd.f32 0.0, %v118
    %120 = vmatmul.f32.gmra.mxu0 %v99
    %v121 = vpop.f32.mrf.mxu0
    %v122 = vadd.f32 0.0, %v121
    %123 = vdwg.mxu0
    %v125 = vsel %vm65, %v31, 0
    %v128 = vsel %vm65, %v32, 0
    %130 = vmatpush.msra.mxu0 0.0
    %131 = vmatpush.msra.mxu0 0.0
    %132 = vmatpush.msra.mxu0 0.0
    %133 = vmatpush.msra.mxu0 0.0
    %134 = vmatpush.msra.mxu0 0.0
    %135 = vmatpush.msra.mxu0 0.0
    %136 = vmatpush.msra.mxu0 0.0
    %137 = vmatpush.msra.mxu0 0.0
    %138 = vmatpush.msra.mxu0 0.0
    %139 = vmatpush.msra.mxu0 0.0
    %140 = vmatpush.msra.mxu0 0.0
    %141 = vmatpush.msra.mxu0 0.0
    %142 = vmatpush.msra.mxu0 %v44
    %143 = vmatpush.msra.mxu0 %v43
    %144 = vmatpush.msra.mxu0 %v42
    %145 = vmatpush.msra.mxu0 %v41
    %146 = vmatmul.f32.gmra.mxu0 %v125
    %v147 = vpop.f32.mrf.mxu0
    %v148 = vadd.f32 0.0, %v147
    %149 = vmatmul.f32.gmra.mxu0 %v128
    %v150 = vpop.f32.mrf.mxu0
    %v151 = vadd.f32 0.0, %v150
    %152 = vdwg.mxu0
    %v153 = vmul.f32 %v119, %v57
    %v154 = vmul.f32 %v122, %v58
    %v155 = vmul.f32 %v119, %v59
    %v156 = vmul.f32 %v122, %v60
    %v157 = vmul.f32 %v119, %v61
    %v158 = vmul.f32 %v122, %v62
    %v159 = vmul.f32 %v119, %v63
    %v160 = vmul.f32 %v122, %v64
    %v161 = vmul.f32 %v148, %v57
    %v162 = vmul.f32 %v151, %v58
    %v163 = vmul.f32 %v148, %v59
    %v164 = vmul.f32 %v151, %v60
    %v165 = vmul.f32 %v148, %v61
    %v166 = vmul.f32 %v151, %v62
    %v167 = vmul.f32 %v148, %v63
    %v168 = vmul.f32 %v151, %v64
    %v169 = vld [vmem:[%s3] sm:$0xff]
    %v170 = vld [vmem:[%s3 + $0x8] sm:$0xff]
    %v172 = vsel %vm65, %v90, 0
    %v175 = vsel %vm65, %v93, 0
    %v178 = vsel %vm65, %v153, 0
    %v181 = vsel %vm65, %v154, 0
    %v184 = vsel %vm65, %v155, 0
    %v187 = vsel %vm65, %v156, 0
    %v190 = vsel %vm65, %v157, 0
    %v193 = vsel %vm65, %v158, 0
    %v196 = vsel %vm65, %v159, 0
    %v199 = vsel %vm65, %v160, 0
    %201 = vmatpush.xpose.msra.mxu0 0.0
    %202 = vmatpush.xpose.msra.mxu0 0.0
    %203 = vmatpush.xpose.msra.mxu0 0.0
    %204 = vmatpush.xpose.msra.mxu0 0.0
    %205 = vmatpush.xpose.msra.mxu0 0.0
    %206 = vmatpush.xpose.msra.mxu0 0.0
    %207 = vmatpush.xpose.msra.mxu0 0.0
    %208 = vmatpush.xpose.msra.mxu0 0.0
    %209 = vmatpush.xpose.msra.mxu0 %v199
    %210 = vmatpush.xpose.msra.mxu0 %v196
    %211 = vmatpush.xpose.msra.mxu0 %v193
    %212 = vmatpush.xpose.msra.mxu0 %v190
    %213 = vmatpush.xpose.msra.mxu0 %v187
    %214 = vmatpush.xpose.msra.mxu0 %v184
    %215 = vmatpush.xpose.msra.mxu0 %v181
    %216 = vmatpush.xpose.msra.mxu0 %v178
    %217 = vmatmul.f32.gmra.mxu0 %v172
    %v218 = vpop.f32.mrf.mxu0
    %v219 = vadd.f32 %v169, %v218
    %220 = vmatmul.f32.gmra.mxu0 %v175
    %v221 = vpop.f32.mrf.mxu0
    %v222 = vadd.f32 %v170, %v221
    %223 = vdwg.mxu0
    %vm224 = vcmask 523264
    %v225 = vsel %vm224, %v219, -inf
    %226 = vmax.xlane.f32.xlu0 %v225
    %v227 = vpop.xlane.xlu0 %226
    %v228 = vsel %vm224, %v222, -inf
    %229 = vmax.xlane.f32.xlu0 %v228
    %v230 = vpop.xlane.xlu0 %229
    %v231 = vsub.f32 %v219, %v227
    %v232 = vsub.f32 %v222, %v230
    %v233 = vmul.f32 %v231, 1.442695
    %v234 = vpow.pop %v233
    %v235 = vmul.f32 %v232, 1.442695
    %v236 = vpow.pop %v235
    %v238 = vsel %vm224, %v234, 0
    %v241 = vsel %vm224, %v236, 0
    %243 = vmatpush.msra.mxu0 0.0
    %244 = vmatpush.msra.mxu0 0.0
    %245 = vmatpush.msra.mxu0 0.0
    %246 = vmatpush.msra.mxu0 0.0
    %247 = vmatpush.msra.mxu0 0.0
    %248 = vmatpush.msra.mxu0 0.0
    %249 = vmatpush.msra.mxu0 0.0
    %250 = vmatpush.msra.mxu0 0.0
    %251 = vmatpush.msra.mxu0 %v64
    %252 = vmatpush.msra.mxu0 %v63
    %253 = vmatpush.msra.mxu0 %v62
    %254 = vmatpush.msra.mxu0 %v61
    %255 = vmatpush.msra.mxu0 %v60
    %256 = vmatpush.msra.mxu0 %v59
    %257 = vmatpush.msra.mxu0 %v58
    %258 = vmatpush.msra.mxu0 %v57
    %259 = vmatmul.f32.gmra.mxu0 %v238
    %v260 = vpop.f32.mrf.mxu0
    %v261 = vadd.f32 0.0, %v260
    %262 = vmatmul.f32.gmra.mxu0 %v241
    %v263 = vpop.f32.mrf.mxu0
    %v264 = vadd.f32 0.0, %v263
    %265 = vdwg.mxu0
    %266 = vmatpush.msra.mxu0 0.0
    %267 = vmatpush.msra.mxu0 0.0
    %268 = vmatpush.msra.mxu0 0.0
    %269 = vmatpush.msra.mxu0 0.0
    %270 = vmatpush.msra.mxu0 0.0
    %271 = vmatpush.msra.mxu0 0.0
    %272 = vmatpush.msra.mxu0 0.0
    %273 = vmatpush.msra.mxu0 0.0
    %274 = vmatpush.msra.mxu0 %v168
    %275 = vmatpush.msra.mxu0 %v167
    %276 = vmatpush.msra.mxu0 %v166
    %277 = vmatpush.msra.mxu0 %v165
    %278 = vmatpush.msra.mxu0 %v164
    %279 = vmatpush.msra.mxu0 %v163
    %280 = vmatpush.msra.mxu0 %v162
    %281 = vmatpush.msra.mxu0 %v161
    %282 = vmatmul.f32.gmra.mxu0 %v238
    %v283 = vpop.f32.mrf.mxu0
    %v284 = vadd.f32 0.0, %v283
    %285 = vmatmul.f32.gmra.mxu0 %v241
    %v286 = vpop.f32.mrf.mxu0
    %v287 = vadd.f32 0.0, %v286
    %288 = vdwg.mxu0
    %v289 = vrcp.pop %v261
    %v290 = vrcp.pop %v264
    %v291 = vmul.f32 %v284, %v289
    %v292 = vmul.f32 %v287, %v290
    %v293 = vld [vmem:[%s6] sm:$0x1]
    %v294 = vperm.slane %v293, 0
    %v296 = vsel %vm65, %v291, 0
    %v299 = vsel %vm65, %v292, 0
    %301 = vmatpush.msra.mxu0 0.0
    %302 = vmatpush.msra.mxu0 0.0
    %303 = vmatpush.msra.mxu0 0.0
    %304 = vmatpush.msra.mxu0 0.0
    %305 = vmatpush.msra.mxu0 0.0
    %306 = vmatpush.msra.mxu0 0.0
    %307 = vmatpush.msra.mxu0 0.0
    %308 = vmatpush.msra.mxu0 0.0
    %309 = vmatpush.msra.mxu0 0.0
    %310 = vmatpush.msra.mxu0 0.0
    %311 = vmatpush.msra.mxu0 0.0
    %312 = vmatpush.msra.mxu0 0.0
    %313 = vmatpush.msra.mxu0 %v48
    %314 = vmatpush.msra.mxu0 %v47
    %315 = vmatpush.msra.mxu0 %v46
    %316 = vmatpush.msra.mxu0 %v45
    %317 = vmatmul.f32.gmra.mxu0 %v296
    %v318 = vpop.f32.mrf.mxu0
    %v319 = vadd.f32 %v294, %v318
    %320 = vmatmul.f32.gmra.mxu0 %v299
    %v321 = vpop.f32.mrf.mxu0
    %v322 = vadd.f32 %v294, %v321
    %323 = vdwg.mxu0
    %v324 = vadd.f32 %v319, %v27
    %v325 = vadd.f32 %v322, %v28
    %v326 = vld [vmem:[%s6 + $0x1] sm:$0x1]
    %v327 = vld [vmem:[%s6 + $0x2] sm:$0x1]
    %v328 = vsel %vm65, %v324, 0.0
    %329 = vadd.xlane.f32.xlu0 %v328
    %v330 = vpop.xlane.xlu0 %329
    %v331 = vsel %vm65, %v325, 0.0
    %332 = vadd.xlane.f32.xlu0 %v331
    %v333 = vpop.xlane.xlu0 %332
    %v334 = vrcp.pop 32.0
    %v335 = vmul.f32 32.0, %v334
    %v336 = vsub.f32 1.0, %v335
    %v337 = vmul.f32 %v334, %v336
    %v338 = vadd.f32 %v334, %v337
    %vm339 = vweird.f32 %v334
    %v340 = vsel %vm339, %v334, %v338
    %v341 = vmul.f32 %v330, %v340
    %v342 = vmul.f32 %v333, %v340
    %v343 = vsub.f32 %v324, %v341
    %v344 = vsub.f32 %v325, %v342
    %v345 = vmul.f32 %v343, %v343
    %v346 = vmul.f32 %v344, %v344
    %v347 = vsel %vm65, %v345, 0.0
    %348 = vadd.xlane.f32.xlu0 %v347
    %v349 = vpop.xlane.xlu0 %348
    %v350 = vsel %vm65, %v346, 0.0
    %351 = vadd.xlane.f32.xlu0 %v350
    %v352 = vpop.xlane.xlu0 %351
    %v353 = vmul.f32 %v349, %v340
    %v354 = vmul.f32 %v352, %v340
    %v355 = vadd.f32 %v353, 1e-05
    %v356 = vadd.f32 %v354, 1e-05
    %v357 = vrsqrt.pop %v355
    %v358 = vmul.f32 %v357, %v355
    %v359 = vmul.f32 %v358, %v357
    %v360 = vmul.f32 0.5, %v359
    %v361 = vsub.f32 1.5, %v360
    %v362 = vmul.f32 %v357, %v361
    %vm363 = vweird.f32 %v355
    %vm364 = vweird.f32 %v357
    %vm365 = vmor %vm363, %vm364
    %v366 = vsel %vm365, %v357, %v362
    %v367 = vrsqrt.pop %v356
    %v368 = vmul.f32 %v367, %v356
    %v369 = vmul.f32 %v368, %v367
    %v370 = vmul.f32 0.5, %v369
    %v371 = vsub.f32 1.5, %v370
    %v372 = vmul.f32 %v367, %v371
    %vm373 = vweird.f32 %v356
    %vm374 = vweird.f32 %v367
    %vm375 = vmor %vm373, %vm374
    %v376 = vsel %vm375, %v367, %v372
    %v377 = vmul.f32 %v343, %v366
    %v378 = vmul.f32 %v344, %v376
    %v379 = vperm.slane %v326, 0
    %v380 = vmul.f32 %v377, %v379
    %v381 = vmul.f32 %v378, %v379
    %v382 = vperm.slane %v327, 0
    %v383 = vadd.f32 %v380, %v382
    %v384 = vadd.f32 %v381, %v382
    %v385 = vld [vmem:[%s5] sm:$0xff]
    %v386 = vld [vmem:[%s5 + $0x8] sm:$0xff]
    %v387 = vld [vmem:[%s5 + $0x10] sm:$0xff]
    %v388 = vld [vmem:[%s5 + $0x18] sm:$0xff]
    %v389 = vld [vmem:[%s5 + $0x20] sm:$0x1]
    %v390 = vperm.slane %v389, 0
    %v392 = vsel %vm65, %v383, 0
    %v395 = vsel %vm65, %v384, 0
    %397 = vmatpush.msra.mxu0 0.0
    %398 = vmatpush.msra.mxu0 0.0
    %399 = vmatpush.msra.mxu0 0.0
    %400 = vmatpush.msra.mxu0 0.0
    %401 = vmatpush.msra.mxu0 0.0
    %402 = vmatpush.msra.mxu0 0.0
    %403 = vmatpush.msra.mxu0 0.0
    %404 = vmatpush.msra.mxu0 0.0
    %405 = vmatpush.msra.mxu0 0.0
    %406 = vmatpush.msra.mxu0 0.0
    %407 = vmatpush.msra.mxu0 0.0
    %408 = vmatpush.msra.mxu0 0.0
    %409 = vmatpush.msra.mxu0 %v388
    %410 = vmatpush.msra.mxu0 %v387
    %411 = vmatpush.msra.mxu0 %v386
    %412 = vmatpush.msra.mxu0 %v385
    %413 = vmatmul.f32.gmra.mxu0 %v392
    %v414 = vpop.f32.mrf.mxu0
    %v415 = vadd.f32 %v390, %v414
    %416 = vmatmul.f32.gmra.mxu0 %v395
    %v417 = vpop.f32.mrf.mxu0
    %v418 = vadd.f32 %v390, %v417
    %419 = vdwg.mxu0
    %v420 = vmax.f32 %v415, 0.0
    %v421 = vmax.f32 %v418, 0.0
    %v422 = vld [vmem:[%s6 + $0x3] sm:$0x1]
    %v423 = vperm.slane %v422, 0
    %v425 = vsel %vm224, %v420, 0
    %v428 = vsel %vm224, %v421, 0
    %430 = vmatpush.msra.mxu0 0.0
    %431 = vmatpush.msra.mxu0 0.0
    %432 = vmatpush.msra.mxu0 0.0
    %433 = vmatpush.msra.mxu0 0.0
    %434 = vmatpush.msra.mxu0 0.0
    %435 = vmatpush.msra.mxu0 0.0
    %436 = vmatpush.msra.mxu0 0.0
    %437 = vmatpush.msra.mxu0 0.0
    %438 = vmatpush.msra.mxu0 %v56
    %439 = vmatpush.msra.mxu0 %v55
    %440 = vmatpush.msra.mxu0 %v54
    %441 = vmatpush.msra.mxu0 %v53
    %442 = vmatpush.msra.mxu0 %v52
    %443 = vmatpush.msra.mxu0 %v51
    %444 = vmatpush.msra.mxu0 %v50
    %445 = vmatpush.msra.mxu0 %v49
    %446 = vmatmul.f32.gmra.mxu0 %v425
    %v447 = vpop.f32.mrf.mxu0
    %v448 = vadd.f32 %v423, %v447
    %449 = vmatmul.f32.gmra.mxu0 %v428
    %v450 = vpop.f32.mrf.mxu0
    %v451 = vadd.f32 %v423, %v450
    %452 = vdwg.mxu0
    %v453 = vadd.f32 %v448, %v383
    %v454 = vadd.f32 %v451, %v384
    %v455 = vld [vmem:[%s6 + $0x4] sm:$0x1]
    %v456 = vld [vmem:[%s6 + $0x5] sm:$0x1]
    %v457 = vsel %vm65, %v453, 0.0
    %458 = vadd.xlane.f32.xlu0 %v457
    %v459 = vpop.xlane.xlu0 %458
    %v460 = vsel %vm65, %v454, 0.0
    %461 = vadd.xlane.f32.xlu0 %v460
    %v462 = vpop.xlane.xlu0 %461
    %v463 = vmul.f32 %v459, %v340
    %v464 = vmul.f32 %v462, %v340
    %v465 = vsub.f32 %v453, %v463
    %v466 = vsub.f32 %v454, %v464
    %v467 = vmul.f32 %v465, %v465
    %v468 = vmul.f32 %v466, %v466
    %v469 = vsel %vm65, %v467, 0.0
    %470 = vadd.xlane.f32.xlu0 %v469
    %v471 = vpop.xlane.xlu0 %470
    %v472 = vsel %vm65, %v468, 0.0
    %473 = vadd.xlane.f32.xlu0 %v472
    %v474 = vpop.xlane.xlu0 %473
    %v475 = vmul.f32 %v471, %v340
    %v476 = vmul.f32 %v474, %v340
    %v477 = vadd.f32 %v475, 1e-05
    %v478 = vadd.f32 %v476, 1e-05
    %v479 = vrsqrt.pop %v477
    %v480 = vmul.f32 %v479, %v477
    %v481 = vmul.f32 %v480, %v479
    %v482 = vmul.f32 0.5, %v481
    %v483 = vsub.f32 1.5, %v482
    %v484 = vmul.f32 %v479, %v483
    %vm485 = vweird.f32 %v477
    %vm486 = vweird.f32 %v479
    %vm487 = vmor %vm485, %vm486
    %v488 = vsel %vm487, %v479, %v484
    %v489 = vrsqrt.pop %v478
    %v490 = vmul.f32 %v489, %v478
    %v491 = vmul.f32 %v490, %v489
    %v492 = vmul.f32 0.5, %v491
    %v493 = vsub.f32 1.5, %v492
    %v494 = vmul.f32 %v489, %v493
    %vm495 = vweird.f32 %v478
    %vm496 = vweird.f32 %v489
    %vm497 = vmor %vm495, %vm496
    %v498 = vsel %vm497, %v489, %v494
    %v499 = vmul.f32 %v465, %v488
    %v500 = vmul.f32 %v466, %v498
    %v501 = vperm.slane %v455, 0
    %v502 = vmul.f32 %v499, %v501
    %v503 = vmul.f32 %v500, %v501
    %v504 = vperm.slane %v456, 0
    %v505 = vadd.f32 %v502, %v504
    %v506 = vadd.f32 %v503, %v504
    %507 = vst.msk [vmem:[#allocation2] sm:$0xff] %vm65, %v505
    %508 = vst.msk [vmem:[#allocation2 + $0x8] sm:$0xff] %vm65, %v506
    // Predicated region
    $region30: #{transformer_block.1} parent=1 // pred_check
      _
    $region31: #{transformer_block.1} parent=1 // pred_check_branch
      %510 = sbr.rel (0) target = $region33
    $region32: #{transformer_block.1} parent=1 // pred_region
      %512 = vsyncadd [#allocation3], 0
      %s513 = sshll.u32 [#allocation2], 4
      %s514 = int_to_ptr.vmem [resolvable:$true] %s513
      %s515 = sshll.u32 %s7, 4
      %s516 = int_to_ptr.hbm [resolvable:$true] %s515
      %521 = dma.vmem_to_hbm [thread:$0]  %s514, 256, %s516, [#allocation3], 128, 128, 8
    $region33: #{transformer_block.1} parent=1 // pred_fallthru
      _
    // Predicated region
    $region34: #{transformer_block.1} parent=1 // pred_check
      _
    $region35: #{transformer_block.1} parent=1 // pred_check_branch
      %523 = sbr.rel (0) target = $region37
    $region36: #{transformer_block.1} parent=1 // pred_region
      %525 = dma.done [#allocation3], 256
    $region37: #{transformer_block.1} parent=1 // pred_fallthru
      _
    %526 = vsyncpa [#allocation3], 1

</llo_original>
